<compile_context>
chip_gen: v7x
topology: tpu7x:2x2x1
jax: 0.10.0
libtpu: 0.0.40
codegen_flags: <defaults>
</compile_context>

<pallas_src>
import math

import jax
import jax.numpy as jnp
from jax import lax
from jax.experimental import pallas as pl
from jax.experimental.pallas import tpu as pltpu

_VMEM_LIMIT = 48 * 1024 * 1024


# ----------------------------------------------------------------------------
# Single-shot matmul + ReLU Pallas kernel (whole K per tile, no accumulator)
# ----------------------------------------------------------------------------
def _matmul_relu_kernel(a_ref, b_ref, o_ref):
    acc = jnp.dot(a_ref[...], b_ref[...], preferred_element_type=jnp.float32)
    o_ref[...] = jnp.maximum(acc, 0.0).astype(o_ref.dtype)


def _pick_tm(M, pref=256):
    # Prefer 256-row tiles; otherwise try to expose 2 blocks (v7x megacore),
    # falling back to the whole M when it cannot be split on 8-row sublanes.
    if M >= 2 * pref and M % pref == 0:
        return pref
    half = M // 2
    if M % 2 == 0 and half >= 8 and half % 8 == 0:
        return half
    return M


def matmul_relu(a, b, *, out_dtype=jnp.bfloat16, tm_pref=256):
    M, K = a.shape
    K2, N = b.shape
    assert K == K2
    tm = _pick_tm(M, tm_pref)
    grid = (M // tm,)
    return pl.pallas_call(
        _matmul_relu_kernel,
        out_shape=jax.ShapeDtypeStruct((M, N), out_dtype),
        grid_spec=pltpu.PrefetchScalarGridSpec(
            num_scalar_prefetch=0,
            grid=grid,
            in_specs=[
                pl.BlockSpec((tm, K), lambda i: (i, 0)),
                pl.BlockSpec((K, N), lambda i: (0, 0)),
            ],
            out_specs=pl.BlockSpec((tm, N), lambda i: (i, 0)),
        ),
        compiler_params=pltpu.CompilerParams(
            dimension_semantics=("parallel",),
            vmem_limit_bytes=_VMEM_LIMIT),
    )(a, b)


# ----------------------------------------------------------------------------
# Conv2d(k=4, s=2, p=1, bias=False) + ReLU via im2col (glue) + Pallas matmul
# ----------------------------------------------------------------------------
def _im2col(x_nhwc, k=4, s=2, p=1):
    N, H, W, C = x_nhwc.shape
    Ho = (H + 2 * p - k) // s + 1
    Wo = (W + 2 * p - k) // s + 1
    xp = jnp.pad(x_nhwc, ((0, 0), (p, p), (p, p), (0, 0)))
    cols = []
    for kh in range(k):
        for kw in range(k):
            cols.append(xp[:, kh:kh + s * Ho:s, kw:kw + s * Wo:s, :])
    patches = jnp.stack(cols, axis=3)                  # (N, Ho, Wo, k*k, C)
    return patches.reshape(N * Ho * Wo, k * k * C), Ho, Wo


def conv2d_relu(x_nhwc, w_hwio, *, k=4, s=2, p=1, out_dtype=jnp.bfloat16):
    # Pad Cin to a multiple of 8 so the contraction dim K = k*k*Cin is a
    # multiple of 128 (conv1: 48 -> 128). Zero channels contribute nothing.
    Cin = x_nhwc.shape[-1]
    pad_c = (-Cin) % 8
    if pad_c:
        x_nhwc = jnp.pad(x_nhwc, ((0, 0), (0, 0), (0, 0), (0, pad_c)))
        w_hwio = jnp.pad(w_hwio, ((0, 0), (0, 0), (0, pad_c), (0, 0)))

    N = x_nhwc.shape[0]
    Cout = w_hwio.shape[-1]
    a, Ho, Wo = _im2col(x_nhwc.astype(jnp.bfloat16), k, s, p)
    b = w_hwio.astype(jnp.bfloat16).reshape(-1, Cout)  # (k*k*Cin, Cout)
    y = matmul_relu(a, b, out_dtype=out_dtype)
    return y.reshape(N, Ho, Wo, Cout)


# ----------------------------------------------------------------------------
# Fused heads kernel (lane-dense, MXU-free):
#   5 x Linear (VPU broadcast-FMA over F features) + sigmoid + reparameterize
#   Layout: feat^T (F, M), eps^T / outputs (Z, M)  -- M is the lane axis.
# ----------------------------------------------------------------------------
def _heads_kernel(ft_ref,
                  wa_ref, wm1_ref, wl1_ref, wm2_ref, wl2_ref,
                  ba_ref, bm1_ref, bl1_ref, bm2_ref, bl2_ref,
                  e1_ref, e2_ref,
                  z_ref, mu1_ref, a_ref, lv1_ref, mu2_ref, lv2_ref):
    ft = ft_ref[...].astype(jnp.float32)               # (F, tl), f32 math
    F = ft.shape[0]

    def lin(wt_ref, b_ref):
        wt = wt_ref[...]                               # (Z, F) f32
        out = wt[:, 0:1] * ft[0:1, :] + b_ref[...]     # (Z,1)*(1,tl)+(Z,1)
        for f in range(1, F):
            out = out + wt[:, f:f + 1] * ft[f:f + 1, :]
        return out                                     # (Z, tl)

    mu1 = lin(wm1_ref, bm1_ref)
    lv1 = lin(wl1_ref, bl1_ref)
    mu2 = lin(wm2_ref, bm2_ref)
    lv2 = lin(wl2_ref, bl2_ref)
    alpha = jax.nn.sigmoid(lin(wa_ref, ba_ref))

    std1 = jnp.exp(0.5 * lv1)
    std2 = jnp.exp(0.5 * lv2)
    z = alpha * (std1 * e1_ref[...] + mu1) \
        + (1.0 - alpha) * (std2 * e2_ref[...] + mu2)

    z_ref[...] = z
    mu1_ref[...] = mu1
    a_ref[...] = alpha
    lv1_ref[...] = lv1
    mu2_ref[...] = mu2
    lv2_ref[...] = lv2


def heads(featT, Ws, bs, eps1T, eps2T, *, tl_pref=512):
    F, M = featT.shape
    Z = Ws[0].shape[1]
    tl = tl_pref if (M >= tl_pref and M % tl_pref == 0) else M
    grid = (M // tl,)

    ft_spec = pl.BlockSpec((F, tl), lambda j: (0, j))
    wt_spec = pl.BlockSpec((Z, F), lambda j: (0, 0))
    b_spec = pl.BlockSpec((Z, 1), lambda j: (0, 0))
    col_spec = pl.BlockSpec((Z, tl), lambda j: (0, j))

    WTs = [jnp.asarray(w, jnp.float32).T for w in Ws]          # (Z, F)
    b2d = [jnp.asarray(b, jnp.float32).reshape(Z, 1) for b in bs]

    out_shape = tuple(jax.ShapeDtypeStruct((Z, M), jnp.float32)
                      for _ in range(6))
    return pl.pallas_call(
        _heads_kernel,
        out_shape=out_shape,
        grid_spec=pltpu.PrefetchScalarGridSpec(
            num_scalar_prefetch=0,
            grid=grid,
            in_specs=[ft_spec] + [wt_spec] * 5 + [b_spec] * 5 + [col_spec] * 2,
            out_specs=[col_spec] * 6,
        ),
        compiler_params=pltpu.CompilerParams(
            dimension_semantics=("parallel",),
            vmem_limit_bytes=_VMEM_LIMIT),
    )(featT, *WTs, *b2d, eps1T, eps2T)


# ----------------------------------------------------------------------------
# Parameter init (deterministic, shapes per Encoder_SVHN.__init__)
# ----------------------------------------------------------------------------
def init_params(key, channel, z_size, feat_in):
    ks = jax.random.split(key, 14)

    def conv_w(k, cin, cout):
        fan = cin * 4 * 4
        return jax.random.normal(k, (4, 4, cin, cout),
                                 jnp.float32) / math.sqrt(fan)

    def lin_wb(kw, kb, fin, fout):
        w = jax.random.normal(kw, (fin, fout), jnp.float32) / math.sqrt(fin)
        b = jax.random.normal(kb, (fout,), jnp.float32) * 0.01
        return w, b

    return {
        "conv1": conv_w(ks[0], channel, 64),
        "conv2": conv_w(ks[1], 64, 128),
        "conv3": conv_w(ks[2], 128, 256),
        "conv4": conv_w(ks[3], 256, 512),
        "alpha1": lin_wb(ks[4], ks[5], feat_in, z_size),
        "mu1": lin_wb(ks[6], ks[7], feat_in, z_size),
        "logvar1": lin_wb(ks[8], ks[9], feat_in, z_size),
        "mu2": lin_wb(ks[10], ks[11], feat_in, z_size),
        "logvar2": lin_wb(ks[12], ks[13], feat_in, z_size),
    }


# ----------------------------------------------------------------------------
# Full forward (Pallas path)
# ----------------------------------------------------------------------------
def encoder_svhn_forward(params, x_nchw, eps1, eps2):
    x = jnp.transpose(x_nchw, (0, 2, 3, 1))            # NCHW -> NHWC
    out = conv2d_relu(x, params["conv1"])
    out = conv2d_relu(out, params["conv2"])
    out = conv2d_relu(out, params["conv3"])
    out = conv2d_relu(out, params["conv4"])            # (N, Hc, Wc, 512) bf16

    # Back to NCHW: the reference applies nn.Linear on the 4-D conv output,
    # i.e. over its last (width) axis.
    out_nchw = jnp.transpose(out, (0, 3, 1, 2))        # (N, 512, Hc, Wc)
    N, C, Hc, Wc = out_nchw.shape
    M = N * C * Hc

    featT = out_nchw.reshape(M, Wc).T                  # (Wc, M): lane-dense M

    names = ("alpha1", "mu1", "logvar1", "mu2", "logvar2")
    Ws = [params[n][0] for n in names]
    bs = [params[n][1] for n in names]
    Z = Ws[0].shape[1]
    e1T = eps1.reshape(M, Z).T                         # (Z, M)
    e2T = eps2.reshape(M, Z).T

    outsT = heads(featT, Ws, bs, e1T, e2T)             # 6 x (Z, M)
    shp = (N, C, Hc, Z)
    return tuple(t.T.reshape(shp) for t in outsT)      # z, mu1, a1, lv1, mu2, lv2


# ----------------------------------------------------------------------------
# Plain-JAX references (for correctness check)
#   matched=True  -> same mixed-precision policy as the Pallas path
#                    (bf16 MXU operands / bf16 conv activations, f32 accum+heads)
#   matched=False -> pure f32 semantics of the original module
# ----------------------------------------------------------------------------
def ref_forward(params, x_nchw, eps1, eps2, *, matched=True):
    cd = jnp.bfloat16 if matched else jnp.float32
    x = jnp.transpose(x_nchw, (0, 2, 3, 1)).astype(cd)

    def conv(h, w):
        y = lax.conv_general_dilated(
            h.astype(cd), w.astype(cd),
            window_strides=(2, 2), padding=((1, 1), (1, 1)),
            dimension_numbers=("NHWC", "HWIO", "NHWC"),
            preferred_element_type=jnp.float32)
        return jnp.maximum(y, 0.0).astype(cd)

    out = conv(x, params["conv1"])
    out = conv(out, params["conv2"])
    out = conv(out, params["conv3"])
    out = conv(out, params["conv4"])
    out_nchw = jnp.transpose(out, (0, 3, 1, 2)).astype(jnp.float32)

    def lin(name):
        w, b = params[name]
        return out_nchw @ w + b

    mu1 = lin("mu1")
    alpha1 = jax.nn.sigmoid(lin("alpha1"))
    lv1 = lin("logvar1")
    mu2 = lin("mu2")
    lv2 = lin("logvar2")
    std1 = jnp.exp(0.5 * lv1)
    std2 = jnp.exp(0.5 * lv2)
    z = alpha1 * (std1 * eps1 + mu1) + (1.0 - alpha1) * (std2 * eps2 + mu2)
    return z, mu1, alpha1, lv1, mu2, lv2


if __name__ == "__main__":
    key = jax.random.PRNGKey(0)
    kx, kp, ke1, ke2 = jax.random.split(key, 4)

    N, Cin, H, W = 2, 3, 32, 32          # small SVHN-like input
    z_size = 32
    Hc, Wc = H // 16, W // 16            # conv4 output spatial (2, 2)

    x = jax.random.normal(kx, (N, Cin, H, W), jnp.float32)
    params = init_params(kp, channel=Cin, z_size=z_size, feat_in=Wc)
    eps1 = jax.random.normal(ke1, (N, 512, Hc, z_size), jnp.float32)
    eps2 = jax.random.normal(ke2, (N, 512, Hc, z_size), jnp.float32)

    outs = encoder_svhn_forward(params, x, eps1, eps2)
    outs = jax.block_until_ready(outs)

    # Tight check against a reference with the same mixed-precision policy
    # (bf16 MXU operands, f32 accumulation) that the Pallas path uses.
    refs_matched = ref_forward(params, x, eps1, eps2, matched=True)
    for o, r in zip(outs, refs_matched):
        assert o.shape == r.shape, (o.shape, r.shape)
        assert jnp.allclose(o, r, rtol=2e-3, atol=2e-3), \
            float(jnp.max(jnp.abs(o - r)))

    # Loose sanity check against the pure-f32 module semantics (differences
    # here come only from the deliberate bf16 MXU-operand quantization).
    refs_f32 = ref_forward(params, x, eps1, eps2, matched=False)
    for o, r in zip(outs, refs_f32):
        assert jnp.allclose(o, r, rtol=1e-1, atol=1e-1), \
            float(jnp.max(jnp.abs(o - r)))

    print("KERNEL_OK")
</pallas_src>

<mosaic_0001>
module attributes {stable_mosaic.version = 11 : i64} {
  func.func @_matmul_relu_kernel(%arg0: i32, %arg1: memref<256x128xbf16, #tpu.memory_space<vmem>>, %arg2: memref<128x64xbf16, #tpu.memory_space<vmem>>, %arg3: memref<256x64xbf16, #tpu.memory_space<vmem>>) attributes {dimension_semantics = [#tpu.dimension_semantics<parallel>], iteration_bounds = array<i64: 2>, scalar_prefetch = 0 : i64, scratch_operands = 0 : i64, tpu.core_type = #tpu.core_type<tc>, window_params = [{transform_indices = @transform_0, window_bounds = array<i64: 256, 128>}, {pipeline_mode = #tpu.pipeline_mode<synchronous>, transform_indices = @transform_1, window_bounds = array<i64: 128, 64>}, {transform_indices = @transform_2, window_bounds = array<i64: 256, 64>}]} {
    %c0 = arith.constant 0 : index
    %c0_0 = arith.constant 0 : index
    %0 = vector.load %arg1[%c0, %c0_0] : memref<256x128xbf16, #tpu.memory_space<vmem>>, vector<256x128xbf16>
    %c0_1 = arith.constant 0 : index
    %c0_2 = arith.constant 0 : index
    %1 = vector.load %arg2[%c0_1, %c0_2] : memref<128x64xbf16, #tpu.memory_space<vmem>>, vector<128x64xbf16>
    %cst = arith.constant dense<0.000000e+00> : vector<256x64xf32>
    %2 = tpu.matmul %0, %1, %cst {dimension_numbers = #tpu.dot_dimension_numbers<[1], [0], [0], [1], [0, 0, 1, 1], [], []>} : vector<256x128xbf16>, vector<128x64xbf16>, vector<256x64xf32> -> vector<256x64xf32>
    %cst_3 = arith.constant 0.000000e+00 : f32
    %3 = vector.broadcast %cst_3 : f32 to vector<256x64xf32>
    %4 = arith.maximumf %2, %3 : vector<256x64xf32>
    %5 = arith.truncf %4 : vector<256x64xf32> to vector<256x64xbf16>
    %c0_4 = arith.constant 0 : index
    %c0_5 = arith.constant 0 : index
    %6 = vector.load %arg3[%c0_4, %c0_5] : memref<256x64xbf16, #tpu.memory_space<vmem>>, vector<256x64xbf16>
    tpu.vector_store %arg3[%c0_4, %c0_5], %5 {strides = array<i32>} : memref<256x64xbf16, #tpu.memory_space<vmem>>, vector<256x64xbf16>,
    return
  }
  func.func @transform_0(%arg0: i32) -> (i32, i32) {
    %c0_i32 = arith.constant 0 : i32
    %c0_i32_0 = arith.constant 0 : i32
    return %arg0, %c0_i32 : i32, i32
  }
  func.func @transform_1(%arg0: i32) -> (i32, i32) {
    %c0_i32 = arith.constant 0 : i32
    %c0_i32_0 = arith.constant 0 : i32
    %c0_i32_1 = arith.constant 0 : i32
    return %c0_i32, %c0_i32_0 : i32, i32
  }
  func.func @transform_2(%arg0: i32) -> (i32, i32) {
    %c0_i32 = arith.constant 0 : i32
    %c0_i32_0 = arith.constant 0 : i32
    return %arg0, %c0_i32 : i32, i32
  }
}

</mosaic_0001>

<llo_original>
// kernel: tpu_custom_call.1
$region0: #{tpu_custom_call.1}
  #allocation0 [shape = 'u32[]', space=smem, size = 0x4, offset = 0x4, fixed_abs, tag = 'smem constant byte address 0x4 - core index']
  #allocation1 [shape = 'u32[144,128]{1,0:T(1,128)}', space=vmem, size = 0x12000, scoped, tag = 'internal scratch']
  %s0 = inlined_call_operand.hbm [shape: bf16[512,128], index: 0, kind: input, shape index: {}]
  %s1 = inlined_call_operand.vmem [shape: bf16[128,64], index: 1, kind: input, shape index: {}]
  %s2 = inlined_call_operand.vmem [shape: bf16[512,64], index: 2, kind: output, shape index: {}]
  %s3 = sld [smem:[#allocation0]]
  $region45: #{tpu_custom_call.1} parent=0
    _
  %s5 = ssub.s32 1, %s3
  %s6 = scalar_select 0, %s5, %s3
  $region1: #{tpu_custom_call.1} parent=0
    #allocation2 [shape = 'u8[131072]{0}', space=vmem, size = 0x20000, scoped, tag = 'input window, operand 0']
    #allocation3 [shape = 's32[2]{0}', space=sflag, size = 0x8, scoped, tag = 'scoped memory for tpu_custom_call.1']
    %7 = vsyncpa [#allocation3], 0
    %s8 = scalar_lea.sflag [#allocation3], 1
    %9 = vsyncpa %s8, 0
    loop: start=0, step=1, limit=4
    $region2: #{tpu_custom_call.1} parent=1 // loop_pre_header
      _
    $region3: #{tpu_custom_call.1} parent=1 // loop_header
      %s11 = sphi 0, %s15
      %p12 = scmp.ge.s32.totalorder %s11, 4
      %s21 = sphi 0, %s23
      %s24 = sphi 0, %s21
      %s25 = sphi 0, %s24
      %s41 = sphi 0, %s25
      %s45 = sphi 0, %s45
      %s47 = sphi 0, %s45
      %s48 = sphi 0, %s47
      %s62 = sphi 0, %s48
      %s68 = sphi 0, %s70
      %s71 = sphi 0, %s68
      %s72 = sphi 0, %s71
      %s88 = sphi 0, %s72
    $region4: #{tpu_custom_call.1} parent=1 // loop_header_branch
      %14 = sbr.rel (%p12) target = $region8
    $region5: #{tpu_custom_call.1} parent=1 // loop_body
      %s16 = ssub.s32 %s11, 1
      %s17 = ssub.s32 %s11, 2
      %s18 = sadd.s32 %s11, 1
      %s19 = ssub.s32 %s11, %s18
      %p20 = scmp.eq.s32.totalorder %s19, 0
      %s22 = sadd.s32 %s21, 1
      %s23 = scalar_select %p20, %s21, %s22
      %p26 = pneg %p20
      %p27 = scmp.eq.s32.totalorder %s11, 1
      %p28 = por %p26, %p27
      %p29 = scmp.ne.s32.totalorder %s21, %s24
      %p30 = scmp.eq.s32.totalorder %s11, 0
      %p31 = por %p29, %p30
      %p32 = scmp.ne.s32.totalorder %s21, %s24
      %p33 = scmp.eq.s32.totalorder %s16, 1
      %p34 = por %p32, %p33
      %p35 = scmp.ne.s32.totalorder %s24, %s25
      %p36 = scmp.eq.s32.totalorder %s16, 0
      %p37 = por %p35, %p36
      %p38 = scmp.ne.s32.totalorder %s24, %s25
      %p39 = scmp.eq.s32.totalorder %s17, 1
      %p40 = por %p38, %p39
      %p42 = scmp.ne.s32.totalorder %s25, %s41
      %p43 = scmp.eq.s32.totalorder %s17, 0
      %p44 = por %p42, %p43
      %s46 = sadd.s32 %s45, 1
      %p49 = scmp.eq.s32.totalorder %s11, 1
      %p50 = scmp.ne.s32.totalorder %s45, %s47
      %p51 = scmp.eq.s32.totalorder %s11, 0
      %p52 = por %p50, %p51
      %p53 = scmp.ne.s32.totalorder %s45, %s47
      %p54 = scmp.eq.s32.totalorder %s16, 1
      %p55 = por %p53, %p54
      %p56 = scmp.ne.s32.totalorder %s47, %s48
      %p57 = scmp.eq.s32.totalorder %s16, 0
      %p58 = por %p56, %p57
      %p59 = scmp.ne.s32.totalorder %s47, %s48
      %p60 = scmp.eq.s32.totalorder %s17, 1
      %p61 = por %p59, %p60
      %p63 = scmp.ne.s32.totalorder %s48, %s62
      %p64 = scmp.eq.s32.totalorder %s17, 0
      %p65 = por %p63, %p64
      %s66 = ssub.s32 %s11, %s18
      %p67 = scmp.eq.s32.totalorder %s66, 0
      %s69 = sadd.s32 %s68, 1
      %s70 = scalar_select %p67, %s68, %s69
      %p73 = pneg %p67
      %p74 = scmp.eq.s32.totalorder %s11, 1
      %p75 = por %p73, %p74
      %p76 = scmp.ne.s32.totalorder %s68, %s71
      %p77 = scmp.eq.s32.totalorder %s11, 0
      %p78 = por %p76, %p77
      %p79 = scmp.ne.s32.totalorder %s68, %s71
      %p80 = scmp.eq.s32.totalorder %s16, 1
      %p81 = por %p79, %p80
      %p82 = scmp.ne.s32.totalorder %s71, %s72
      %p83 = scmp.eq.s32.totalorder %s16, 0
      %p84 = por %p82, %p83
      %p85 = scmp.ne.s32.totalorder %s71, %s72
      %p86 = scmp.eq.s32.totalorder %s17, 1
      %p87 = por %p85, %p86
      %p89 = scmp.ne.s32.totalorder %s72, %s88
      %p90 = scmp.eq.s32.totalorder %s17, 0
      %p91 = por %p89, %p90
      %p92 = scmp.le.s32.totalorder 1, %s11
      %p93 = scmp.lt.s32.totalorder %s11, 3
      %p94 = pnand %p92, %p93
      %p95 = pneg %p94
      // Predicated region
      $region9: #{tpu_custom_call.1} parent=5 // pred_check
        _
      $region10: #{tpu_custom_call.1} parent=5 // pred_check_branch
        %97 = sbr.rel (%p94) target = $region12
      $region11: #{tpu_custom_call.1} parent=5 // pred_region
        %s98 = ssub.s32 %s11, 1
        // Predicated region
        $region13: #{tpu_custom_call.1} parent=11 // pred_check
          %p99 = pneg %p58
        $region14: #{tpu_custom_call.1} parent=11 // pred_check_branch
          %101 = sbr.rel (%p99) target = $region16
        $region15: #{tpu_custom_call.1} parent=11 // pred_region
          _
        $region16: #{tpu_custom_call.1} parent=11 // pred_fallthru
          _
      $region12: #{tpu_custom_call.1} parent=5 // pred_fallthru
        _
      %p102 = scmp.lt.s32.totalorder %s11, 2
      // Predicated region
      $region17: #{tpu_custom_call.1} parent=5 // pred_check
        %p103 = pneg %p102
      $region18: #{tpu_custom_call.1} parent=5 // pred_check_branch
        %105 = sbr.rel (%p103) target = $region20
      $region19: #{tpu_custom_call.1} parent=5 // pred_region
        // Predicated region
        $region21: #{tpu_custom_call.1} parent=19 // pred_check
          %p106 = pneg %p31
        $region22: #{tpu_custom_call.1} parent=19 // pred_check_branch
          %108 = sbr.rel (%p106) target = $region24
        $region23: #{tpu_custom_call.1} parent=19 // pred_region
          %s109 = sand.u32 %s21, 1
          %s110 = scalar_lea.sflag [#allocation3], %s109
          %s111 = sand.u32 %s21, 1
          %s112 = smul.addr %s111, 128
          %s113 = scalar_lea.vmem [#allocation2], %s112
          %s114 = smul.u32 32, %s11
          %s116 = ssub.s32 2048, 2048
          %117 = vsyncadd %s110, %s116
          %s118 = smul.addr %s114, 64
          %s119 = scalar_lea.hbm %s0, %s118
          %s120 = sshll.u32 %s113, 4
          %s121 = int_to_ptr.vmem [resolvable:$true] %s120
          %126 = dma.hbm_to_vmem [thread:$0]  %s119, 2048, %s121, %s110, 64, 64, 4
        $region24: #{tpu_custom_call.1} parent=19 // pred_fallthru
          _
      $region20: #{tpu_custom_call.1} parent=5 // pred_fallthru
        _
      %p127 = scmp.le.s32.totalorder 1, %s11
      %p128 = scmp.lt.s32.totalorder %s11, 3
      %p129 = pnand %p127, %p128
      %p130 = pneg %p129
      // Predicated region
      $region25: #{tpu_custom_call.1} parent=5 // pred_check
        _
      $region26: #{tpu_custom_call.1} parent=5 // pred_check_branch
        %132 = sbr.rel (%p129) target = $region28
      $region27: #{tpu_custom_call.1} parent=5 // pred_region
        %s133 = ssub.s32 %s11, 1
        %s134 = sand.u32 %s24, 1
        %s135 = scalar_lea.sflag [#allocation3], %s134
        %s136 = sand.u32 %s24, 1
        %s137 = smul.addr %s136, 128
        %s138 = scalar_lea.vmem [#allocation2], %s137
        // Predicated region
        $region29: #{tpu_custom_call.1} parent=27 // pred_check
          %p139 = pneg %p37
        $region30: #{tpu_custom_call.1} parent=27 // pred_check_branch
          %141 = sbr.rel (%p139) target = $region32
        $region31: #{tpu_custom_call.1} parent=27 // pred_region
          %142 = dma.done %s135, 2048
        $region32: #{tpu_custom_call.1} parent=27 // pred_fallthru
          _
        %s143 = sand.u32 %s24, 1
        %s144 = scalar_lea.sflag [#allocation3], %s143
        %s145 = sand.u32 %s24, 1
        %s146 = smul.addr %s145, 128
        %s147 = scalar_lea.vmem [#allocation2], %s146
        %p148 = pneg %p37
        %p149 = pneg %p34
        %p150 = pneg %p58
        %p151 = pneg %p55
        %p152 = pneg %p84
        %p153 = pneg %p81
        %s154 = smul.u32 32, %s16
        %p155 = scmp.lt.s32.totalorder %s154, 63
        %s156 = scalar_select %p155, %s154, 63
        %s157 = smul.addr %s156, 4
        %s158 = scalar_lea.vmem %s2, %s157
        %s159 = smul.u32 32, %s16
        %s160 = smul.u32 32, %s16
        %p161 = scmp.lt.s32.totalorder %s160, 63
        %s162 = scalar_select %p161, %s160, 63
        %s163 = smul.addr %s162, 4
        %s164 = scalar_lea.vmem %s2, %s163
        %s165 = smul.u32 32, %s16
        %v167 = vld [vmem:[%s138] sm:$0xf]
        %v168 = vld [vmem:[%s138 + $0x4] sm:$0xf]
        %v169 = vld [vmem:[%s138 + $0x8] sm:$0xf]
        %v170 = vld [vmem:[%s138 + $0xc] sm:$0xf]
        %v171 = vld [vmem:[%s138 + $0x10] sm:$0xf]
        %v172 = vld [vmem:[%s138 + $0x14] sm:$0xf]
        %v173 = vld [vmem:[%s138 + $0x18] sm:$0xf]
        %v174 = vld [vmem:[%s138 + $0x1c] sm:$0xf]
        %v175 = vld [vmem:[%s138 + $0x20] sm:$0xf]
        %v176 = vld [vmem:[%s138 + $0x24] sm:$0xf]
        %v177 = vld [vmem:[%s138 + $0x28] sm:$0xf]
        %v178 = vld [vmem:[%s138 + $0x2c] sm:$0xf]
        %v179 = vld [vmem:[%s138 + $0x30] sm:$0xf]
        %v180 = vld [vmem:[%s138 + $0x34] sm:$0xf]
        %v181 = vld [vmem:[%s138 + $0x38] sm:$0xf]
        %v182 = vld [vmem:[%s138 + $0x3c] sm:$0xf]
        %v183 = vld [vmem:[%s138 + $0x40] sm:$0xf]
        %v184 = vld [vmem:[%s138 + $0x44] sm:$0xf]
        %v185 = vld [vmem:[%s138 + $0x48] sm:$0xf]
        %v186 = vld [vmem:[%s138 + $0x4c] sm:$0xf]
        %v187 = vld [vmem:[%s138 + $0x50] sm:$0xf]
        %v188 = vld [vmem:[%s138 + $0x54] sm:$0xf]
        %v189 = vld [vmem:[%s138 + $0x58] sm:$0xf]
        %v190 = vld [vmem:[%s138 + $0x5c] sm:$0xf]
        %v191 = vld [vmem:[%s138 + $0x60] sm:$0xf]
        %v192 = vld [vmem:[%s138 + $0x64] sm:$0xf]
        %v193 = vld [vmem:[%s138 + $0x68] sm:$0xf]
        %v194 = vld [vmem:[%s138 + $0x6c] sm:$0xf]
        %v195 = vld [vmem:[%s138 + $0x70] sm:$0xf]
        %v196 = vld [vmem:[%s138 + $0x74] sm:$0xf]
        %v197 = vld [vmem:[%s138 + $0x78] sm:$0xf]
        %v198 = vld [vmem:[%s138 + $0x7c] sm:$0xf]
        %v199 = vld [vmem:[%s1] sm:$0xf]
        %v200 = vld [vmem:[%s1 + $0x4] sm:$0xf]
        %v201 = vld [vmem:[%s1 + $0x8] sm:$0xf]
        %v202 = vld [vmem:[%s1 + $0xc] sm:$0xf]
        %v203 = vld [vmem:[%s1 + $0x10] sm:$0xf]
        %v204 = vld [vmem:[%s1 + $0x14] sm:$0xf]
        %v205 = vld [vmem:[%s1 + $0x18] sm:$0xf]
        %v206 = vld [vmem:[%s1 + $0x1c] sm:$0xf]
        %v207 = vld [vmem:[%s1 + $0x20] sm:$0xf]
        %v208 = vld [vmem:[%s1 + $0x24] sm:$0xf]
        %v209 = vld [vmem:[%s1 + $0x28] sm:$0xf]
        %v210 = vld [vmem:[%s1 + $0x2c] sm:$0xf]
        %v211 = vld [vmem:[%s1 + $0x30] sm:$0xf]
        %v212 = vld [vmem:[%s1 + $0x34] sm:$0xf]
        %v213 = vld [vmem:[%s1 + $0x38] sm:$0xf]
        %v214 = vld [vmem:[%s1 + $0x3c] sm:$0xf]
        %v247 = vunpack.c.l.b16 %v167
        %v248 = vunpack.c.l.b16 %v168
        %v249 = vunpack.c.l.b16 %v169
        %v250 = vunpack.c.l.b16 %v170
        %v251 = vunpack.c.l.b16 %v171
        %v252 = vunpack.c.l.b16 %v172
        %v253 = vunpack.c.l.b16 %v173
        %v254 = vunpack.c.l.b16 %v174
        %v255 = vunpack.c.l.b16 %v175
        %v256 = vunpack.c.l.b16 %v176
        %v257 = vunpack.c.l.b16 %v177
        %v258 = vunpack.c.l.b16 %v178
        %v259 = vunpack.c.l.b16 %v179
        %v260 = vunpack.c.l.b16 %v180
        %v261 = vunpack.c.l.b16 %v181
        %v262 = vunpack.c.l.b16 %v182
        %v263 = vunpack.c.l.b16 %v183
        %v264 = vunpack.c.l.b16 %v184
        %v265 = vunpack.c.l.b16 %v185
        %v266 = vunpack.c.l.b16 %v186
        %v267 = vunpack.c.l.b16 %v187
        %v268 = vunpack.c.l.b16 %v188
        %v269 = vunpack.c.l.b16 %v189
        %v270 = vunpack.c.l.b16 %v190
        %v271 = vunpack.c.l.b16 %v191
        %v272 = vunpack.c.l.b16 %v192
        %v273 = vunpack.c.l.b16 %v193
        %v274 = vunpack.c.l.b16 %v194
        %v275 = vunpack.c.l.b16 %v195
        %v276 = vunpack.c.l.b16 %v196
        %v277 = vunpack.c.l.b16 %v197
        %v278 = vunpack.c.l.b16 %v198
        %v279 = vpack.c.b16 %v248, %v247
        %v280 = vpack.c.b16 %v250, %v249
        %v281 = vpack.c.b16 %v252, %v251
        %v282 = vpack.c.b16 %v254, %v253
        %v283 = vpack.c.b16 %v256, %v255
        %v284 = vpack.c.b16 %v258, %v257
        %v285 = vpack.c.b16 %v260, %v259
        %v286 = vpack.c.b16 %v262, %v261
        %v287 = vpack.c.b16 %v264, %v263
        %v288 = vpack.c.b16 %v266, %v265
        %v289 = vpack.c.b16 %v268, %v267
        %v290 = vpack.c.b16 %v270, %v269
        %v291 = vpack.c.b16 %v272, %v271
        %v292 = vpack.c.b16 %v274, %v273
        %v293 = vpack.c.b16 %v276, %v275
        %v294 = vpack.c.b16 %v278, %v277
        %v327 = vunpack.c.l.b16 %v199
        %v328 = vunpack.c.l.b16 %v200
        %v329 = vunpack.c.l.b16 %v201
        %v330 = vunpack.c.l.b16 %v202
        %v331 = vunpack.c.l.b16 %v203
        %v332 = vunpack.c.l.b16 %v204
        %v333 = vunpack.c.l.b16 %v205
        %v334 = vunpack.c.l.b16 %v206
        %v335 = vunpack.c.l.b16 %v207
        %v336 = vunpack.c.l.b16 %v208
        %v337 = vunpack.c.l.b16 %v209
        %v338 = vunpack.c.l.b16 %v210
        %v339 = vunpack.c.l.b16 %v211
        %v340 = vunpack.c.l.b16 %v212
        %v341 = vunpack.c.l.b16 %v213
        %v342 = vunpack.c.l.b16 %v214
        %v343 = vpack.c.b16 %v328, %v327
        %v344 = vpack.c.b16 %v330, %v329
        %v345 = vpack.c.b16 %v332, %v331
        %v346 = vpack.c.b16 %v334, %v333
        %v347 = vpack.c.b16 %v336, %v335
        %v348 = vpack.c.b16 %v338, %v337
        %v349 = vpack.c.b16 %v340, %v339
        %v350 = vpack.c.b16 %v342, %v341
        %359 = vmatprep.subr.bf16.mxu0 0
        %360 = vmatpush1.bf16.msra.mxu0 %v343
        %361 = vmatprep.subr.bf16.mxu0 0
        %362 = vmatpush1.bf16.msra.mxu0 %v344
        %363 = vmatprep.subr.bf16.mxu0 0
        %364 = vmatpush1.bf16.msra.mxu0 %v345
        %365 = vmatprep.subr.bf16.mxu0 0
        %366 = vmatpush1.bf16.msra.mxu0 %v346
        %367 = vmatprep.subr.bf16.mxu0 0
        %368 = vmatpush1.bf16.msra.mxu0 %v347
        %369 = vmatprep.subr.bf16.mxu0 0
        %370 = vmatpush1.bf16.msra.mxu0 %v348
        %371 = vmatprep.subr.bf16.mxu0 0
        %372 = vmatpush1.bf16.msra.mxu0 %v349
        %373 = vmatprep.subr.bf16.mxu0 0
        %374 = vmatpush1.bf16.msra.mxu0 %v350
        %375 = vmatprep.subr.bf16.mxu0 0
        %376 = vmatpush1.bf16.msra.mxu0 0
        %377 = vmatprep.subr.bf16.mxu0 0
        %378 = vmatpush1.bf16.msra.mxu0 0
        %379 = vmatprep.subr.bf16.mxu0 0
        %380 = vmatpush1.bf16.msra.mxu0 0
        %381 = vmatprep.subr.bf16.mxu0 0
        %382 = vmatpush1.bf16.msra.mxu0 0
        %383 = vmatprep.subr.bf16.mxu0 0
        %384 = vmatpush1.bf16.msra.mxu0 0
        %385 = vmatprep.subr.bf16.mxu0 0
        %386 = vmatpush1.bf16.msra.mxu0 0
        %387 = vmatprep.subr.bf16.mxu0 0
        %388 = vmatpush1.bf16.msra.mxu0 0
        %389 = vmatprep.subr.bf16.mxu0 0
        %390 = vmatpush1.bf16.msra.mxu0 0
        %391 = vmatprep.mubr.bf16.mxu0 0
        %392 = vmatmul.mubr.bf16.gmra.mrb[0].mxu0 %v279
        %v393 = vpop.f32.mrb[0].mxu0
        %v394 = vadd.f32 0.0, %v393
        %v395 = vpop.f32.mrb[0].mxu0
        %v396 = vpop.f32.mrb[0].mxu0
        %v397 = vadd.f32 0.0, %v396
        %v398 = vpop.f32.mrb[0].mxu0
        %399 = vmatprep.mubr.bf16.mxu0 0
        %400 = vmatmul.mubr.bf16.gmra.mrb[0].mxu0 %v280
        %v401 = vpop.f32.mrb[0].mxu0
        %v402 = vadd.f32 0.0, %v401
        %v403 = vpop.f32.mrb[0].mxu0
        %v404 = vpop.f32.mrb[0].mxu0
        %v405 = vadd.f32 0.0, %v404
        %v406 = vpop.f32.mrb[0].mxu0
        %407 = vmatprep.mubr.bf16.mxu0 0
        %408 = vmatmul.mubr.bf16.gmra.mrb[0].mxu0 %v281
        %v409 = vpop.f32.mrb[0].mxu0
        %v410 = vadd.f32 0.0, %v409
        %v411 = vpop.f32.mrb[0].mxu0
        %v412 = vpop.f32.mrb[0].mxu0
        %v413 = vadd.f32 0.0, %v412
        %v414 = vpop.f32.mrb[0].mxu0
        %415 = vmatprep.mubr.bf16.mxu0 0
        %416 = vmatmul.mubr.bf16.gmra.mrb[0].mxu0 %v282
        %v417 = vpop.f32.mrb[0].mxu0
        %v418 = vadd.f32 0.0, %v417
        %v419 = vpop.f32.mrb[0].mxu0
        %v420 = vpop.f32.mrb[0].mxu0
        %v421 = vadd.f32 0.0, %v420
        %v422 = vpop.f32.mrb[0].mxu0
        %423 = vmatprep.mubr.bf16.mxu0 0
        %424 = vmatmul.mubr.bf16.gmra.mrb[0].mxu0 %v283
        %v425 = vpop.f32.mrb[0].mxu0
        %v426 = vadd.f32 0.0, %v425
        %v427 = vpop.f32.mrb[0].mxu0
        %v428 = vpop.f32.mrb[0].mxu0
        %v429 = vadd.f32 0.0, %v428
        %v430 = vpop.f32.mrb[0].mxu0
        %431 = vmatprep.mubr.bf16.mxu0 0
        %432 = vmatmul.mubr.bf16.gmra.mrb[0].mxu0 %v284
        %v433 = vpop.f32.mrb[0].mxu0
        %v434 = vadd.f32 0.0, %v433
        %v435 = vpop.f32.mrb[0].mxu0
        %v436 = vpop.f32.mrb[0].mxu0
        %v437 = vadd.f32 0.0, %v436
        %v438 = vpop.f32.mrb[0].mxu0
        %439 = vmatprep.mubr.bf16.mxu0 0
        %440 = vmatmul.mubr.bf16.gmra.mrb[0].mxu0 %v285
        %v441 = vpop.f32.mrb[0].mxu0
        %v442 = vadd.f32 0.0, %v441
        %v443 = vpop.f32.mrb[0].mxu0
        %v444 = vpop.f32.mrb[0].mxu0
        %v445 = vadd.f32 0.0, %v444
        %v446 = vpop.f32.mrb[0].mxu0
        %447 = vmatprep.mubr.bf16.mxu0 0
        %448 = vmatmul.mubr.bf16.gmra.mrb[0].mxu0 %v286
        %v449 = vpop.f32.mrb[0].mxu0
        %v450 = vadd.f32 0.0, %v449
        %v451 = vpop.f32.mrb[0].mxu0
        %v452 = vpop.f32.mrb[0].mxu0
        %v453 = vadd.f32 0.0, %v452
        %v454 = vpop.f32.mrb[0].mxu0
        %455 = vmatprep.mubr.bf16.mxu0 0
        %456 = vmatmul.mubr.bf16.gmra.mrb[0].mxu0 %v287
        %v457 = vpop.f32.mrb[0].mxu0
        %v458 = vadd.f32 0.0, %v457
        %v459 = vpop.f32.mrb[0].mxu0
        %v460 = vpop.f32.mrb[0].mxu0
        %v461 = vadd.f32 0.0, %v460
        %v462 = vpop.f32.mrb[0].mxu0
        %463 = vmatprep.mubr.bf16.mxu0 0
        %464 = vmatmul.mubr.bf16.gmra.mrb[0].mxu0 %v288
        %v465 = vpop.f32.mrb[0].mxu0
        %v466 = vadd.f32 0.0, %v465
        %v467 = vpop.f32.mrb[0].mxu0
        %v468 = vpop.f32.mrb[0].mxu0
        %v469 = vadd.f32 0.0, %v468
        %v470 = vpop.f32.mrb[0].mxu0
        %471 = vmatprep.mubr.bf16.mxu0 0
        %472 = vmatmul.mubr.bf16.gmra.mrb[0].mxu0 %v289
        %v473 = vpop.f32.mrb[0].mxu0
        %v474 = vadd.f32 0.0, %v473
        %v475 = vpop.f32.mrb[0].mxu0
        %v476 = vpop.f32.mrb[0].mxu0
        %v477 = vadd.f32 0.0, %v476
        %v478 = vpop.f32.mrb[0].mxu0
        %479 = vmatprep.mubr.bf16.mxu0 0
        %480 = vmatmul.mubr.bf16.gmra.mrb[0].mxu0 %v290
        %v481 = vpop.f32.mrb[0].mxu0
        %v482 = vadd.f32 0.0, %v481
        %v483 = vpop.f32.mrb[0].mxu0
        %v484 = vpop.f32.mrb[0].mxu0
        %v485 = vadd.f32 0.0, %v484
        %v486 = vpop.f32.mrb[0].mxu0
        %487 = vmatprep.mubr.bf16.mxu0 0
        %488 = vmatmul.mubr.bf16.gmra.mrb[0].mxu0 %v291
        %v489 = vpop.f32.mrb[0].mxu0
        %v490 = vadd.f32 0.0, %v489
        %v491 = vpop.f32.mrb[0].mxu0
        %v492 = vpop.f32.mrb[0].mxu0
        %v493 = vadd.f32 0.0, %v492
        %v494 = vpop.f32.mrb[0].mxu0
        %495 = vmatprep.mubr.bf16.mxu0 0
        %496 = vmatmul.mubr.bf16.gmra.mrb[0].mxu0 %v292
        %v497 = vpop.f32.mrb[0].mxu0
        %v498 = vadd.f32 0.0, %v497
        %v499 = vpop.f32.mrb[0].mxu0
        %v500 = vpop.f32.mrb[0].mxu0
        %v501 = vadd.f32 0.0, %v500
        %v502 = vpop.f32.mrb[0].mxu0
        %503 = vmatprep.mubr.bf16.mxu0 0
        %504 = vmatmul.mubr.bf16.gmra.mrb[0].mxu0 %v293
        %v505 = vpop.f32.mrb[0].mxu0
        %v506 = vadd.f32 0.0, %v505
        %v507 = vpop.f32.mrb[0].mxu0
        %v508 = vpop.f32.mrb[0].mxu0
        %v509 = vadd.f32 0.0, %v508
        %v510 = vpop.f32.mrb[0].mxu0
        %511 = vmatprep.mubr.bf16.mxu0 0
        %512 = vmatmul.mubr.bf16.gmra.mrb[0].mxu0 %v294
        %v513 = vpop.f32.mrb[0].mxu0
        %v514 = vadd.f32 0.0, %v513
        %v515 = vpop.f32.mrb[0].mxu0
        %v516 = vpop.f32.mrb[0].mxu0
        %v517 = vadd.f32 0.0, %v516
        %v518 = vpop.f32.mrb[0].mxu0
        %519 = vdwg.mxu0
        %v520 = vmax.f32 %v394, 0.0
        %v521 = vmax.f32 %v397, 0.0
        %v522 = vmax.f32 %v402, 0.0
        %v523 = vmax.f32 %v405, 0.0
        %v524 = vmax.f32 %v410, 0.0
        %v525 = vmax.f32 %v413, 0.0
        %v526 = vmax.f32 %v418, 0.0
        %v527 = vmax.f32 %v421, 0.0
        %v528 = vmax.f32 %v426, 0.0
        %v529 = vmax.f32 %v429, 0.0
        %v530 = vmax.f32 %v434, 0.0
        %v531 = vmax.f32 %v437, 0.0
        %v532 = vmax.f32 %v442, 0.0
        %v533 = vmax.f32 %v445, 0.0
        %v534 = vmax.f32 %v450, 0.0
        %v535 = vmax.f32 %v453, 0.0
        %v536 = vmax.f32 %v458, 0.0
        %v537 = vmax.f32 %v461, 0.0
        %v538 = vmax.f32 %v466, 0.0
        %v539 = vmax.f32 %v469, 0.0
        %v540 = vmax.f32 %v474, 0.0
        %v541 = vmax.f32 %v477, 0.0
        %v542 = vmax.f32 %v482, 0.0
        %v543 = vmax.f32 %v485, 0.0
        %v544 = vmax.f32 %v490, 0.0
        %v545 = vmax.f32 %v493, 0.0
        %v546 = vmax.f32 %v498, 0.0
        %v547 = vmax.f32 %v501, 0.0
        %v548 = vmax.f32 %v506, 0.0
        %v549 = vmax.f32 %v509, 0.0
        %v550 = vmax.f32 %v514, 0.0
        %v551 = vmax.f32 %v517, 0.0
        %v552 = vpack.c.bf16 %v521, %v520
        %v553 = vpack.c.bf16 %v523, %v522
        %v554 = vpack.c.bf16 %v525, %v524
        %v555 = vpack.c.bf16 %v527, %v526
        %v556 = vpack.c.bf16 %v529, %v528
        %v557 = vpack.c.bf16 %v531, %v530
        %v558 = vpack.c.bf16 %v533, %v532
        %v559 = vpack.c.bf16 %v535, %v534
        %v560 = vpack.c.bf16 %v537, %v536
        %v561 = vpack.c.bf16 %v539, %v538
        %v562 = vpack.c.bf16 %v541, %v540
        %v563 = vpack.c.bf16 %v543, %v542
        %v564 = vpack.c.bf16 %v545, %v544
        %v565 = vpack.c.bf16 %v547, %v546
        %v566 = vpack.c.bf16 %v549, %v548
        %v567 = vpack.c.bf16 %v551, %v550
        %v584 = vunpack.c.l.b16 %v552
        %v585 = vunpack.c.h.b16 %v552
        %v586 = vunpack.c.l.b16 %v553
        %v587 = vunpack.c.h.b16 %v553
        %v588 = vunpack.c.l.b16 %v554
        %v589 = vunpack.c.h.b16 %v554
        %v590 = vunpack.c.l.b16 %v555
        %v591 = vunpack.c.h.b16 %v555
        %v592 = vunpack.c.l.b16 %v556
        %v593 = vunpack.c.h.b16 %v556
        %v594 = vunpack.c.l.b16 %v557
        %v595 = vunpack.c.h.b16 %v557
        %v596 = vunpack.c.l.b16 %v558
        %v597 = vunpack.c.h.b16 %v558
        %v598 = vunpack.c.l.b16 %v559
        %v599 = vunpack.c.h.b16 %v559
        %v600 = vunpack.c.l.b16 %v560
        %v601 = vunpack.c.h.b16 %v560
        %v602 = vunpack.c.l.b16 %v561
        %v603 = vunpack.c.h.b16 %v561
        %v604 = vunpack.c.l.b16 %v562
        %v605 = vunpack.c.h.b16 %v562
        %v606 = vunpack.c.l.b16 %v563
        %v607 = vunpack.c.h.b16 %v563
        %v608 = vunpack.c.l.b16 %v564
        %v609 = vunpack.c.h.b16 %v564
        %v610 = vunpack.c.l.b16 %v565
        %v611 = vunpack.c.h.b16 %v565
        %v612 = vunpack.c.l.b16 %v566
        %v613 = vunpack.c.h.b16 %v566
        %v614 = vunpack.c.l.b16 %v567
        %v615 = vunpack.c.h.b16 %v567
        %v616 = vpack.c.b16 %v584, %v584
        %v617 = vpack.c.b16 %v585, %v585
        %v618 = vpack.c.b16 %v586, %v586
        %v619 = vpack.c.b16 %v587, %v587
        %v620 = vpack.c.b16 %v588, %v588
        %v621 = vpack.c.b16 %v589, %v589
        %v622 = vpack.c.b16 %v590, %v590
        %v623 = vpack.c.b16 %v591, %v591
        %v624 = vpack.c.b16 %v592, %v592
        %v625 = vpack.c.b16 %v593, %v593
        %v626 = vpack.c.b16 %v594, %v594
        %v627 = vpack.c.b16 %v595, %v595
        %v628 = vpack.c.b16 %v596, %v596
        %v629 = vpack.c.b16 %v597, %v597
        %v630 = vpack.c.b16 %v598, %v598
        %v631 = vpack.c.b16 %v599, %v599
        %v632 = vpack.c.b16 %v600, %v600
        %v633 = vpack.c.b16 %v601, %v601
        %v634 = vpack.c.b16 %v602, %v602
        %v635 = vpack.c.b16 %v603, %v603
        %v636 = vpack.c.b16 %v604, %v604
        %v637 = vpack.c.b16 %v605, %v605
        %v638 = vpack.c.b16 %v606, %v606
        %v639 = vpack.c.b16 %v607, %v607
        %v640 = vpack.c.b16 %v608, %v608
        %v641 = vpack.c.b16 %v609, %v609
        %v642 = vpack.c.b16 %v610, %v610
        %v643 = vpack.c.b16 %v611, %v611
        %v644 = vpack.c.b16 %v612, %v612
        %v645 = vpack.c.b16 %v613, %v613
        %v646 = vpack.c.b16 %v614, %v614
        %v647 = vpack.c.b16 %v615, %v615
        %vm680 = vcmask 519168
        %681 = vst.msk [vmem:[%s164] sm:$0xf] %vm680, %v616
        %682 = vst.msk [vmem:[%s164 + $0x4] sm:$0xf] %vm680, %v617
        %683 = vst.msk [vmem:[%s164 + $0x8] sm:$0xf] %vm680, %v618
        %684 = vst.msk [vmem:[%s164 + $0xc] sm:$0xf] %vm680, %v619
        %685 = vst.msk [vmem:[%s164 + $0x10] sm:$0xf] %vm680, %v620
        %686 = vst.msk [vmem:[%s164 + $0x14] sm:$0xf] %vm680, %v621
        %687 = vst.msk [vmem:[%s164 + $0x18] sm:$0xf] %vm680, %v622
        %688 = vst.msk [vmem:[%s164 + $0x1c] sm:$0xf] %vm680, %v623
        %689 = vst.msk [vmem:[%s164 + $0x20] sm:$0xf] %vm680, %v624
        %690 = vst.msk [vmem:[%s164 + $0x24] sm:$0xf] %vm680, %v625
        %691 = vst.msk [vmem:[%s164 + $0x28] sm:$0xf] %vm680, %v626
        %692 = vst.msk [vmem:[%s164 + $0x2c] sm:$0xf] %vm680, %v627
        %693 = vst.msk [vmem:[%s164 + $0x30] sm:$0xf] %vm680, %v628
        %694 = vst.msk [vmem:[%s164 + $0x34] sm:$0xf] %vm680, %v629
        %695 = vst.msk [vmem:[%s164 + $0x38] sm:$0xf] %vm680, %v630
        %696 = vst.msk [vmem:[%s164 + $0x3c] sm:$0xf] %vm680, %v631
        %697 = vst.msk [vmem:[%s164 + $0x40] sm:$0xf] %vm680, %v632
        %698 = vst.msk [vmem:[%s164 + $0x44] sm:$0xf] %vm680, %v633
        %699 = vst.msk [vmem:[%s164 + $0x48] sm:$0xf] %vm680, %v634
        %700 = vst.msk [vmem:[%s164 + $0x4c] sm:$0xf] %vm680, %v635
        %701 = vst.msk [vmem:[%s164 + $0x50] sm:$0xf] %vm680, %v636
        %702 = vst.msk [vmem:[%s164 + $0x54] sm:$0xf] %vm680, %v637
        %703 = vst.msk [vmem:[%s164 + $0x58] sm:$0xf] %vm680, %v638
        %704 = vst.msk [vmem:[%s164 + $0x5c] sm:$0xf] %vm680, %v639
        %705 = vst.msk [vmem:[%s164 + $0x60] sm:$0xf] %vm680, %v640
        %706 = vst.msk [vmem:[%s164 + $0x64] sm:$0xf] %vm680, %v641
        %707 = vst.msk [vmem:[%s164 + $0x68] sm:$0xf] %vm680, %v642
        %708 = vst.msk [vmem:[%s164 + $0x6c] sm:$0xf] %vm680, %v643
        %709 = vst.msk [vmem:[%s164 + $0x70] sm:$0xf] %vm680, %v644
        %710 = vst.msk [vmem:[%s164 + $0x74] sm:$0xf] %vm680, %v645
        %711 = vst.msk [vmem:[%s164 + $0x78] sm:$0xf] %vm680, %v646
        %712 = vst.msk [vmem:[%s164 + $0x7c] sm:$0xf] %vm680, %v647
        %s713 = smul.u32 32, %s16
        %p714 = scmp.lt.s32.totalorder %s713, 63
        %s715 = scalar_select %p714, %s713, 63
        %s716 = smul.addr %s715, 4
        %s717 = scalar_lea.vmem %s2, %s716
        // Predicated region
        $region33: #{tpu_custom_call.1} parent=27 // pred_check
          %p718 = pneg %p81
        $region34: #{tpu_custom_call.1} parent=27 // pred_check_branch
          %720 = sbr.rel (%p718) target = $region36
        $region35: #{tpu_custom_call.1} parent=27 // pred_region
          %s721 = smul.u32 32, %s16
        $region36: #{tpu_custom_call.1} parent=27 // pred_fallthru
          _
      $region28: #{tpu_custom_call.1} parent=5 // pred_fallthru
        _
      %p722 = scmp.le.s32.totalorder 2, %s11
      // Predicated region
      $region37: #{tpu_custom_call.1} parent=5 // pred_check
        %p723 = pneg %p722
      $region38: #{tpu_custom_call.1} parent=5 // pred_check_branch
        %725 = sbr.rel (%p723) target = $region40
      $region39: #{tpu_custom_call.1} parent=5 // pred_region
        %s726 = ssub.s32 %s11, 2
        // Predicated region
        $region41: #{tpu_custom_call.1} parent=39 // pred_check
          %p727 = pneg %p87
        $region42: #{tpu_custom_call.1} parent=39 // pred_check_branch
          %729 = sbr.rel (%p727) target = $region44
        $region43: #{tpu_custom_call.1} parent=39 // pred_region
          %s730 = smul.u32 32, %s17
          %p731 = scmp.lt.s32.totalorder %s730, 63
          %s732 = scalar_select %p731, %s730, 63
          %s733 = smul.addr %s732, 4
          %s734 = scalar_lea.vmem %s2, %s733
        $region44: #{tpu_custom_call.1} parent=39 // pred_fallthru
          _
      $region40: #{tpu_custom_call.1} parent=5 // pred_fallthru
        _
    $region6: #{tpu_custom_call.1} parent=1 // loop_footer
      %s15 = sadd.s32 1, %s11
    $region7: #{tpu_custom_call.1} parent=1 // loop_footer_branch
      %10 = sbr.rel target = $region3
    $region8: #{tpu_custom_call.1} parent=1 // loop_exit
      _
    %735 = vsyncpa [#allocation3], 1
    %s736 = scalar_lea.sflag [#allocation3], 1
    %737 = vsyncpa %s736, 1

</llo_original>
